<compile_context>
chip_gen: v7x
topology: tpu7x:2x2x1
jax: 0.10.0
libtpu: 0.0.40
codegen_flags: <defaults>
</compile_context>

<pallas_src>
import functools

import jax
import jax.numpy as jnp
from jax.experimental import pallas as pl
from jax.experimental.pallas import tpu as pltpu


# ----------------------------------------------------------------------------
# Fused kernel: per batch element, build norm = D^-1/2 (A_bin + I) D^-1/2 once
# (bf16, VMEM resident), then run all GCNConv layers in F-major layout.
# ----------------------------------------------------------------------------
def _fused_gcn_kernel(adj_ref, x_ref, *refs, num_layers, batch_tile):
    # refs = (w_t0, b0, w_t1, b1, ..., w_t{L-1}, b{L-1}, out_ref)
    out_ref = refs[2 * num_layers]

    for bi in range(batch_tile):
        # ---- gcn_norm (PyG, unweighted edges, add_remaining_self_loops) ----
        a = adj_ref[bi]                                      # (N, N) int8, [src, dst]
        n = a.shape[0]
        row = jax.lax.broadcasted_iota(jnp.int32, (n, n), 0)
        col = jax.lax.broadcasted_iota(jnp.int32, (n, n), 1)
        # Binarize + force self-loops in one fused mask -> single f32 (N,N) temp.
        # NOTE: edge weights are discarded (edge_index semantics of the reference).
        a_hat = ((a != 0) | (row == col)).astype(jnp.float32)
        deg = jnp.sum(a_hat, axis=0, keepdims=True)          # in-degree incl. self, (1,N)
        dinv = jax.lax.rsqrt(deg)                            # deg >= 1 always
        # norm[src, dst] = dinv[src] * a_hat[src, dst] * dinv[dst]
        # Reused by every layer as the bf16 MXU RHS; no transpose needed in F-major.
        norm = ((a_hat * dinv) * jnp.transpose(dinv)).astype(jnp.bfloat16)   # (N, N)

        # ---- layer loop: F-major activations (F on sublanes, N on lanes) ----
        h = jnp.transpose(x_ref[bi]).astype(jnp.float32)     # (F_in, N)
        for li in range(num_layers):
            w_t = refs[2 * li][...]                          # bf16 (F_out_l, F_in_l)
            bias = refs[2 * li + 1][...]                     # f32  (F_out_l, 1)
            f_out_l, f_in_l = w_t.shape
            if f_in_l < f_out_l:
                # Aggregate first: the O(N^2 * F) matmul runs at the smaller F.
                agg = jnp.dot(h.astype(jnp.bfloat16), norm,
                              preferred_element_type=jnp.float32)        # (F_in, N)
                h = jnp.dot(w_t, agg.astype(jnp.bfloat16),
                            preferred_element_type=jnp.float32) + bias   # (F_out, N)
            else:
                proj = jnp.dot(w_t, h.astype(jnp.bfloat16),
                               preferred_element_type=jnp.float32)       # (F_out, N)
                h = jnp.dot(proj.astype(jnp.bfloat16), norm,
                            preferred_element_type=jnp.float32) + bias   # (F_out, N)
            if li + 1 < num_layers:
                neg = jnp.exp(jnp.minimum(h, 0.0)) - 1.0     # ELU(alpha=1), f32 (EUP)
                h = jnp.where(h > 0.0, h, neg)
                # TODO(synk): dropout(p=0.2) only applies in training mode; eval here.

        out_ref[bi] = h.astype(out_ref.dtype)                # lane-dense (F_out, N) store


def _vmem_limit_bytes():
    """~3/4 of per-core VMEM (≈96 MiB on v5e/v6e, ≈48 MiB on v7x); safe fallback."""
    try:
        cap = int(pltpu.get_tpu_info().vmem_capacity_bytes)
        return int(min(cap * 3 // 4, 100 * 1024 * 1024))
    except Exception:
        return 48 * 1024 * 1024      # fits every generation (v7x has 64 MiB / TC)


def _pick_batch_tile(batch, n, f_in, f_max, vmem_limit):
    """Largest divisor of `batch` whose per-step working set fits ~half of VMEM."""
    per_b = (2 * n * n                 # int8 adjacency block, double-buffered
             + 2 * n * f_in * 4        # x block, double-buffered
             + 2 * f_max * n * 4       # output block, double-buffered
             + 6 * n * n               # a_hat (f32) + norm (bf16) temporaries
             + 6 * f_max * n * 4)      # activation / matmul temporaries (conservative)
    budget = max(vmem_limit // 2, per_b)
    bt = 1
    for cand in range(1, batch + 1):
        if batch % cand == 0 and cand * per_b <= budget:
            bt = cand
    return bt


def gcn_vanilla_forward(x, adj, weights, biases, training=False):
    """x: [B, N, F_in], adj: [B, N, N] (nonzero = edge) -> [B, N, msg_out_size]."""
    del training  # TODO(synk): eval mode only; dropout(p=0.2) not applied.
    B, N, f_in = x.shape
    num_layers = len(weights)
    f_out = weights[-1].shape[1]
    f_max = max(max(w.shape) for w in weights)

    x = x.astype(jnp.float32)
    # Narrow adjacency stream (int8 0/1): 4x fewer HBM bytes than f32.
    if adj.dtype != jnp.int8:
        adj = (adj != 0).astype(jnp.int8)
    # F-major parameters: pre-transposed bf16 weights, column-vector f32 biases.
    w_t = [jnp.transpose(w).astype(jnp.bfloat16) for w in weights]
    b_col = [jnp.reshape(b, (-1, 1)).astype(jnp.float32) for b in biases]

    vmem_limit = _vmem_limit_bytes()
    bt = _pick_batch_tile(B, N, f_in, f_max, vmem_limit)

    in_specs = [
        pl.BlockSpec((bt, N, N), lambda b: (b, 0, 0)),       # int8 adjacency
        pl.BlockSpec((bt, N, f_in), lambda b: (b, 0, 0)),    # node features
    ]
    wb_inputs = []
    for w, bias in zip(w_t, b_col):
        in_specs.append(pl.BlockSpec(w.shape, lambda b: (0, 0)))      # grid-invariant
        in_specs.append(pl.BlockSpec(bias.shape, lambda b: (0, 0)))   # grid-invariant
        wb_inputs += [w, bias]

    kernel = functools.partial(_fused_gcn_kernel,
                               num_layers=num_layers, batch_tile=bt)
    out_fmajor = pl.pallas_call(
        kernel,
        out_shape=jax.ShapeDtypeStruct((B, f_out, N), jnp.float32),
        grid=(B // bt,),
        in_specs=in_specs,
        out_specs=pl.BlockSpec((bt, f_out, N), lambda b: (b, 0, 0)),
        compiler_params=pltpu.CompilerParams(
            # On v7x, pltpu.CORE_PARALLEL here would split the batch across both TCs.
            dimension_semantics=("parallel",),
            vmem_limit_bytes=vmem_limit,
        ),
    )(adj, x, *wb_inputs)
    # Back to the reference [B, N, F_out] layout (cheap relative to the B*N^2 stream).
    return jnp.transpose(out_fmajor, (0, 2, 1))


def init_params(key, input_dim, msg_hidden_dim, msg_out_size, num_layers):
    """Deterministic glorot-uniform weights / zero biases for each GCNConv."""
    dims = [input_dim] + [msg_hidden_dim] * (num_layers - 1) + [msg_out_size]
    weights, biases = [], []
    for i in range(num_layers):
        key, sub = jax.random.split(key)
        f_in, f_out = dims[i], dims[i + 1]
        limit = jnp.sqrt(6.0 / (f_in + f_out))
        w = jax.random.uniform(sub, (f_in, f_out), jnp.float32, -limit, limit)
        weights.append(w)
        biases.append(jnp.zeros((f_out,), jnp.float32))
    return weights, biases


if __name__ == "__main__":
    # Small synthetic config (args): msg_hidden_dim=32, msg_out_size=16, num_layers=3
    B, N, F_IN = 2, 16, 8
    MSG_HIDDEN, MSG_OUT, NUM_LAYERS = 32, 16, 3

    key = jax.random.PRNGKey(0)
    k_x, k_adj, k_w = jax.random.split(key, 3)

    x = jax.random.normal(k_x, (B, N, F_IN), dtype=jnp.float32)
    # Random symmetric 0/1 adjacency, already int8 (no enforced self-loops;
    # kernel adds them).
    rand_adj = jax.random.uniform(k_adj, (B, N, N)) < 0.3
    adj = (rand_adj | jnp.transpose(rand_adj, (0, 2, 1))).astype(jnp.int8)

    weights, biases = init_params(k_w, F_IN, MSG_HIDDEN, MSG_OUT, NUM_LAYERS)

    out = gcn_vanilla_forward(x, adj, weights, biases, training=False)
    out = jax.block_until_ready(out)
    assert out.shape == (B, N, MSG_OUT), out.shape
    assert bool(jnp.all(jnp.isfinite(out)))
    print("KERNEL_OK")
</pallas_src>

<mosaic_0001>
module attributes {stable_mosaic.version = 11 : i64} {
  func.func @_fused_gcn_kernel(%arg0: i32, %arg1: memref<2x16x16xi8, #tpu.memory_space<vmem>>, %arg2: memref<2x16x8xf32, #tpu.memory_space<vmem>>, %arg3: memref<32x8xbf16, #tpu.memory_space<vmem>>, %arg4: memref<32x1xf32, #tpu.memory_space<vmem>>, %arg5: memref<32x32xbf16, #tpu.memory_space<vmem>>, %arg6: memref<32x1xf32, #tpu.memory_space<vmem>>, %arg7: memref<16x32xbf16, #tpu.memory_space<vmem>>, %arg8: memref<16x1xf32, #tpu.memory_space<vmem>>, %arg9: memref<2x16x16xf32, #tpu.memory_space<vmem>>) attributes {dimension_semantics = [#tpu.dimension_semantics<parallel>], iteration_bounds = array<i64: 1>, scalar_prefetch = 0 : i64, scratch_operands = 0 : i64, tpu.core_type = #tpu.core_type<tc>, window_params = [{transform_indices = @transform_0, window_bounds = array<i64: 2, 16, 16>}, {transform_indices = @transform_1, window_bounds = array<i64: 2, 16, 8>}, {pipeline_mode = #tpu.pipeline_mode<synchronous>, transform_indices = @transform_2, window_bounds = array<i64: 32, 8>}, {pipeline_mode = #tpu.pipeline_mode<synchronous>, transform_indices = @transform_3, window_bounds = array<i64: 32, 1>}, {pipeline_mode = #tpu.pipeline_mode<synchronous>, transform_indices = @transform_4, window_bounds = array<i64: 32, 32>}, {pipeline_mode = #tpu.pipeline_mode<synchronous>, transform_indices = @transform_5, window_bounds = array<i64: 32, 1>}, {pipeline_mode = #tpu.pipeline_mode<synchronous>, transform_indices = @transform_6, window_bounds = array<i64: 16, 32>}, {pipeline_mode = #tpu.pipeline_mode<synchronous>, transform_indices = @transform_7, window_bounds = array<i64: 16, 1>}, {transform_indices = @transform_8, window_bounds = array<i64: 2, 16, 16>}]} {
    %c0 = arith.constant 0 : index
    %c0_0 = arith.constant 0 : index
    %c0_1 = arith.constant 0 : index
    %0 = vector.load %arg1[%c0, %c0_0, %c0_1] : memref<2x16x16xi8, #tpu.memory_space<vmem>>, vector<1x16x16xi8>
    %1 = vector.shape_cast %0 : vector<1x16x16xi8> to vector<16x16xi8>
    %2 = tpu.iota {dimensions = array<i32: 0>} : vector<16x16xi32>
    %3 = tpu.iota {dimensions = array<i32: 1>} : vector<16x16xi32>
    %c0_i8 = arith.constant 0 : i8
    %4 = vector.broadcast %c0_i8 : i8 to vector<16x16xi8>
    %5 = arith.cmpi ne, %1, %4 : vector<16x16xi8>
    %6 = arith.cmpi eq, %2, %3 : vector<16x16xi32>
    %7 = arith.ori %5, %6 : vector<16x16xi1>
    %8 = arith.extui %7 : vector<16x16xi1> to vector<16x16xi32>
    %9 = arith.sitofp %8 : vector<16x16xi32> to vector<16x16xf32>
    %cst = arith.constant dense<0.000000e+00> : vector<16xf32>
    %10 = vector.multi_reduction <add>, %9, %cst [0] : vector<16x16xf32> to vector<16xf32>
    %11 = vector.shape_cast %10 : vector<16xf32> to vector<1x16xf32>
    %12 = math.rsqrt %11 : vector<1x16xf32>
    %13 = vector.broadcast %12 : vector<1x16xf32> to vector<16x16xf32>
    %14 = arith.mulf %9, %13 : vector<16x16xf32>
    %15 = tpu.transpose %12, [1, 0] : vector<1x16xf32> -> vector<16x1xf32>
    %16 = vector.broadcast %15 : vector<16x1xf32> to vector<16x16xf32>
    %17 = arith.mulf %14, %16 : vector<16x16xf32>
    %18 = arith.truncf %17 : vector<16x16xf32> to vector<16x16xbf16>
    %c0_2 = arith.constant 0 : index
    %c0_3 = arith.constant 0 : index
    %c0_4 = arith.constant 0 : index
    %19 = vector.load %arg2[%c0_2, %c0_3, %c0_4] : memref<2x16x8xf32, #tpu.memory_space<vmem>>, vector<1x16x8xf32>
    %20 = vector.shape_cast %19 : vector<1x16x8xf32> to vector<16x8xf32>
    %21 = tpu.transpose %20, [1, 0] : vector<16x8xf32> -> vector<8x16xf32>
    %c0_5 = arith.constant 0 : index
    %c0_6 = arith.constant 0 : index
    %22 = vector.load %arg3[%c0_5, %c0_6] : memref<32x8xbf16, #tpu.memory_space<vmem>>, vector<32x8xbf16>
    %c0_7 = arith.constant 0 : index
    %c0_8 = arith.constant 0 : index
    %23 = vector.load %arg4[%c0_7, %c0_8] : memref<32x1xf32, #tpu.memory_space<vmem>>, vector<32x1xf32>
    %24 = arith.truncf %21 : vector<8x16xf32> to vector<8x16xbf16>
    %cst_9 = arith.constant dense<0.000000e+00> : vector<8x16xf32>
    %25 = tpu.matmul %24, %18, %cst_9 {dimension_numbers = #tpu.dot_dimension_numbers<[1], [0], [0], [1], [0, 0, 1, 1], [], []>} : vector<8x16xbf16>, vector<16x16xbf16>, vector<8x16xf32> -> vector<8x16xf32>
    %26 = arith.truncf %25 : vector<8x16xf32> to vector<8x16xbf16>
    %cst_10 = arith.constant dense<0.000000e+00> : vector<32x16xf32>
    %27 = tpu.matmul %22, %26, %cst_10 {dimension_numbers = #tpu.dot_dimension_numbers<[1], [0], [0], [1], [0, 0, 1, 1], [], []>} : vector<32x8xbf16>, vector<8x16xbf16>, vector<32x16xf32> -> vector<32x16xf32>
    %28 = vector.broadcast %23 : vector<32x1xf32> to vector<32x16xf32>
    %29 = arith.addf %27, %28 : vector<32x16xf32>
    %cst_11 = arith.constant 0.000000e+00 : f32
    %30 = vector.broadcast %cst_11 : f32 to vector<32x16xf32>
    %31 = arith.minimumf %29, %30 : vector<32x16xf32>
    %32 = math.exp %31 : vector<32x16xf32>
    %cst_12 = arith.constant 1.000000e+00 : f32
    %33 = vector.broadcast %cst_12 : f32 to vector<32x16xf32>
    %34 = arith.subf %32, %33 : vector<32x16xf32>
    %cst_13 = arith.constant 0.000000e+00 : f32
    %35 = vector.broadcast %cst_13 : f32 to vector<32x16xf32>
    %36 = arith.cmpf ogt, %29, %35 : vector<32x16xf32>
    %37 = arith.select %36, %29, %34 : vector<32x16xi1>, vector<32x16xf32>
    %c0_14 = arith.constant 0 : index
    %c0_15 = arith.constant 0 : index
    %38 = vector.load %arg5[%c0_14, %c0_15] : memref<32x32xbf16, #tpu.memory_space<vmem>>, vector<32x32xbf16>
    %c0_16 = arith.constant 0 : index
    %c0_17 = arith.constant 0 : index
    %39 = vector.load %arg6[%c0_16, %c0_17] : memref<32x1xf32, #tpu.memory_space<vmem>>, vector<32x1xf32>
    %40 = arith.truncf %37 : vector<32x16xf32> to vector<32x16xbf16>
    %cst_18 = arith.constant dense<0.000000e+00> : vector<32x16xf32>
    %41 = tpu.matmul %38, %40, %cst_18 {dimension_numbers = #tpu.dot_dimension_numbers<[1], [0], [0], [1], [0, 0, 1, 1], [], []>} : vector<32x32xbf16>, vector<32x16xbf16>, vector<32x16xf32> -> vector<32x16xf32>
    %42 = arith.truncf %41 : vector<32x16xf32> to vector<32x16xbf16>
    %cst_19 = arith.constant dense<0.000000e+00> : vector<32x16xf32>
    %43 = tpu.matmul %42, %18, %cst_19 {dimension_numbers = #tpu.dot_dimension_numbers<[1], [0], [0], [1], [0, 0, 1, 1], [], []>} : vector<32x16xbf16>, vector<16x16xbf16>, vector<32x16xf32> -> vector<32x16xf32>
    %44 = vector.broadcast %39 : vector<32x1xf32> to vector<32x16xf32>
    %45 = arith.addf %43, %44 : vector<32x16xf32>
    %cst_20 = arith.constant 0.000000e+00 : f32
    %46 = vector.broadcast %cst_20 : f32 to vector<32x16xf32>
    %47 = arith.minimumf %45, %46 : vector<32x16xf32>
    %48 = math.exp %47 : vector<32x16xf32>
    %cst_21 = arith.constant 1.000000e+00 : f32
    %49 = vector.broadcast %cst_21 : f32 to vector<32x16xf32>
    %50 = arith.subf %48, %49 : vector<32x16xf32>
    %cst_22 = arith.constant 0.000000e+00 : f32
    %51 = vector.broadcast %cst_22 : f32 to vector<32x16xf32>
    %52 = arith.cmpf ogt, %45, %51 : vector<32x16xf32>
    %53 = arith.select %52, %45, %50 : vector<32x16xi1>, vector<32x16xf32>
    %c0_23 = arith.constant 0 : index
    %c0_24 = arith.constant 0 : index
    %54 = vector.load %arg7[%c0_23, %c0_24] : memref<16x32xbf16, #tpu.memory_space<vmem>>, vector<16x32xbf16>
    %c0_25 = arith.constant 0 : index
    %c0_26 = arith.constant 0 : index
    %55 = vector.load %arg8[%c0_25, %c0_26] : memref<16x1xf32, #tpu.memory_space<vmem>>, vector<16x1xf32>
    %56 = arith.truncf %53 : vector<32x16xf32> to vector<32x16xbf16>
    %cst_27 = arith.constant dense<0.000000e+00> : vector<16x16xf32>
    %57 = tpu.matmul %54, %56, %cst_27 {dimension_numbers = #tpu.dot_dimension_numbers<[1], [0], [0], [1], [0, 0, 1, 1], [], []>} : vector<16x32xbf16>, vector<32x16xbf16>, vector<16x16xf32> -> vector<16x16xf32>
    %58 = arith.truncf %57 : vector<16x16xf32> to vector<16x16xbf16>
    %cst_28 = arith.constant dense<0.000000e+00> : vector<16x16xf32>
    %59 = tpu.matmul %58, %18, %cst_28 {dimension_numbers = #tpu.dot_dimension_numbers<[1], [0], [0], [1], [0, 0, 1, 1], [], []>} : vector<16x16xbf16>, vector<16x16xbf16>, vector<16x16xf32> -> vector<16x16xf32>
    %60 = vector.broadcast %55 : vector<16x1xf32> to vector<16x16xf32>
    %61 = arith.addf %59, %60 : vector<16x16xf32>
    %c0_29 = arith.constant 0 : index
    %c0_30 = arith.constant 0 : index
    %c0_31 = arith.constant 0 : index
    %62 = vector.load %arg9[%c0_29, %c0_30, %c0_31] : memref<2x16x16xf32, #tpu.memory_space<vmem>>, vector<1x16x16xf32>
    %63 = vector.shape_cast %62 : vector<1x16x16xf32> to vector<16x16xf32>
    %64 = vector.shape_cast %61 : vector<16x16xf32> to vector<1x16x16xf32>
    tpu.vector_store %arg9[%c0_29, %c0_30, %c0_31], %64 {strides = array<i32>} : memref<2x16x16xf32, #tpu.memory_space<vmem>>, vector<1x16x16xf32>,
    %c1 = arith.constant 1 : index
    %c0_32 = arith.constant 0 : index
    %c0_33 = arith.constant 0 : index
    %65 = vector.load %arg1[%c1, %c0_32, %c0_33] : memref<2x16x16xi8, #tpu.memory_space<vmem>>, vector<1x16x16xi8>
    %66 = vector.shape_cast %65 : vector<1x16x16xi8> to vector<16x16xi8>
    %67 = tpu.iota {dimensions = array<i32: 0>} : vector<16x16xi32>
    %68 = tpu.iota {dimensions = array<i32: 1>} : vector<16x16xi32>
    %c0_i8_34 = arith.constant 0 : i8
    %69 = vector.broadcast %c0_i8_34 : i8 to vector<16x16xi8>
    %70 = arith.cmpi ne, %66, %69 : vector<16x16xi8>
    %71 = arith.cmpi eq, %67, %68 : vector<16x16xi32>
    %72 = arith.ori %70, %71 : vector<16x16xi1>
    %73 = arith.extui %72 : vector<16x16xi1> to vector<16x16xi32>
    %74 = arith.sitofp %73 : vector<16x16xi32> to vector<16x16xf32>
    %cst_35 = arith.constant dense<0.000000e+00> : vector<16xf32>
    %75 = vector.multi_reduction <add>, %74, %cst_35 [0] : vector<16x16xf32> to vector<16xf32>
    %76 = vector.shape_cast %75 : vector<16xf32> to vector<1x16xf32>
    %77 = math.rsqrt %76 : vector<1x16xf32>
    %78 = vector.broadcast %77 : vector<1x16xf32> to vector<16x16xf32>
    %79 = arith.mulf %74, %78 : vector<16x16xf32>
    %80 = tpu.transpose %77, [1, 0] : vector<1x16xf32> -> vector<16x1xf32>
    %81 = vector.broadcast %80 : vector<16x1xf32> to vector<16x16xf32>
    %82 = arith.mulf %79, %81 : vector<16x16xf32>
    %83 = arith.truncf %82 : vector<16x16xf32> to vector<16x16xbf16>
    %c1_36 = arith.constant 1 : index
    %c0_37 = arith.constant 0 : index
    %c0_38 = arith.constant 0 : index
    %84 = vector.load %arg2[%c1_36, %c0_37, %c0_38] : memref<2x16x8xf32, #tpu.memory_space<vmem>>, vector<1x16x8xf32>
    %85 = vector.shape_cast %84 : vector<1x16x8xf32> to vector<16x8xf32>
    %86 = tpu.transpose %85, [1, 0] : vector<16x8xf32> -> vector<8x16xf32>
    %c0_39 = arith.constant 0 : index
    %c0_40 = arith.constant 0 : index
    %87 = vector.load %arg3[%c0_39, %c0_40] : memref<32x8xbf16, #tpu.memory_space<vmem>>, vector<32x8xbf16>
    %c0_41 = arith.constant 0 : index
    %c0_42 = arith.constant 0 : index
    %88 = vector.load %arg4[%c0_41, %c0_42] : memref<32x1xf32, #tpu.memory_space<vmem>>, vector<32x1xf32>
    %89 = arith.truncf %86 : vector<8x16xf32> to vector<8x16xbf16>
    %cst_43 = arith.constant dense<0.000000e+00> : vector<8x16xf32>
    %90 = tpu.matmul %89, %83, %cst_43 {dimension_numbers = #tpu.dot_dimension_numbers<[1], [0], [0], [1], [0, 0, 1, 1], [], []>} : vector<8x16xbf16>, vector<16x16xbf16>, vector<8x16xf32> -> vector<8x16xf32>
    %91 = arith.truncf %90 : vector<8x16xf32> to vector<8x16xbf16>
    %cst_44 = arith.constant dense<0.000000e+00> : vector<32x16xf32>
    %92 = tpu.matmul %87, %91, %cst_44 {dimension_numbers = #tpu.dot_dimension_numbers<[1], [0], [0], [1], [0, 0, 1, 1], [], []>} : vector<32x8xbf16>, vector<8x16xbf16>, vector<32x16xf32> -> vector<32x16xf32>
    %93 = vector.broadcast %88 : vector<32x1xf32> to vector<32x16xf32>
    %94 = arith.addf %92, %93 : vector<32x16xf32>
    %cst_45 = arith.constant 0.000000e+00 : f32
    %95 = vector.broadcast %cst_45 : f32 to vector<32x16xf32>
    %96 = arith.minimumf %94, %95 : vector<32x16xf32>
    %97 = math.exp %96 : vector<32x16xf32>
    %cst_46 = arith.constant 1.000000e+00 : f32
    %98 = vector.broadcast %cst_46 : f32 to vector<32x16xf32>
    %99 = arith.subf %97, %98 : vector<32x16xf32>
    %cst_47 = arith.constant 0.000000e+00 : f32
    %100 = vector.broadcast %cst_47 : f32 to vector<32x16xf32>
    %101 = arith.cmpf ogt, %94, %100 : vector<32x16xf32>
    %102 = arith.select %101, %94, %99 : vector<32x16xi1>, vector<32x16xf32>
    %c0_48 = arith.constant 0 : index
    %c0_49 = arith.constant 0 : index
    %103 = vector.load %arg5[%c0_48, %c0_49] : memref<32x32xbf16, #tpu.memory_space<vmem>>, vector<32x32xbf16>
    %c0_50 = arith.constant 0 : index
    %c0_51 = arith.constant 0 : index
    %104 = vector.load %arg6[%c0_50, %c0_51] : memref<32x1xf32, #tpu.memory_space<vmem>>, vector<32x1xf32>
    %105 = arith.truncf %102 : vector<32x16xf32> to vector<32x16xbf16>
    %cst_52 = arith.constant dense<0.000000e+00> : vector<32x16xf32>
    %106 = tpu.matmul %103, %105, %cst_52 {dimension_numbers = #tpu.dot_dimension_numbers<[1], [0], [0], [1], [0, 0, 1, 1], [], []>} : vector<32x32xbf16>, vector<32x16xbf16>, vector<32x16xf32> -> vector<32x16xf32>
    %107 = arith.truncf %106 : vector<32x16xf32> to vector<32x16xbf16>
    %cst_53 = arith.constant dense<0.000000e+00> : vector<32x16xf32>
    %108 = tpu.matmul %107, %83, %cst_53 {dimension_numbers = #tpu.dot_dimension_numbers<[1], [0], [0], [1], [0, 0, 1, 1], [], []>} : vector<32x16xbf16>, vector<16x16xbf16>, vector<32x16xf32> -> vector<32x16xf32>
    %109 = vector.broadcast %104 : vector<32x1xf32> to vector<32x16xf32>
    %110 = arith.addf %108, %109 : vector<32x16xf32>
    %cst_54 = arith.constant 0.000000e+00 : f32
    %111 = vector.broadcast %cst_54 : f32 to vector<32x16xf32>
    %112 = arith.minimumf %110, %111 : vector<32x16xf32>
    %113 = math.exp %112 : vector<32x16xf32>
    %cst_55 = arith.constant 1.000000e+00 : f32
    %114 = vector.broadcast %cst_55 : f32 to vector<32x16xf32>
    %115 = arith.subf %113, %114 : vector<32x16xf32>
    %cst_56 = arith.constant 0.000000e+00 : f32
    %116 = vector.broadcast %cst_56 : f32 to vector<32x16xf32>
    %117 = arith.cmpf ogt, %110, %116 : vector<32x16xf32>
    %118 = arith.select %117, %110, %115 : vector<32x16xi1>, vector<32x16xf32>
    %c0_57 = arith.constant 0 : index
    %c0_58 = arith.constant 0 : index
    %119 = vector.load %arg7[%c0_57, %c0_58] : memref<16x32xbf16, #tpu.memory_space<vmem>>, vector<16x32xbf16>
    %c0_59 = arith.constant 0 : index
    %c0_60 = arith.constant 0 : index
    %120 = vector.load %arg8[%c0_59, %c0_60] : memref<16x1xf32, #tpu.memory_space<vmem>>, vector<16x1xf32>
    %121 = arith.truncf %118 : vector<32x16xf32> to vector<32x16xbf16>
    %cst_61 = arith.constant dense<0.000000e+00> : vector<16x16xf32>
    %122 = tpu.matmul %119, %121, %cst_61 {dimension_numbers = #tpu.dot_dimension_numbers<[1], [0], [0], [1], [0, 0, 1, 1], [], []>} : vector<16x32xbf16>, vector<32x16xbf16>, vector<16x16xf32> -> vector<16x16xf32>
    %123 = arith.truncf %122 : vector<16x16xf32> to vector<16x16xbf16>
    %cst_62 = arith.constant dense<0.000000e+00> : vector<16x16xf32>
    %124 = tpu.matmul %123, %83, %cst_62 {dimension_numbers = #tpu.dot_dimension_numbers<[1], [0], [0], [1], [0, 0, 1, 1], [], []>} : vector<16x16xbf16>, vector<16x16xbf16>, vector<16x16xf32> -> vector<16x16xf32>
    %125 = vector.broadcast %120 : vector<16x1xf32> to vector<16x16xf32>
    %126 = arith.addf %124, %125 : vector<16x16xf32>
    %c1_63 = arith.constant 1 : index
    %c0_64 = arith.constant 0 : index
    %c0_65 = arith.constant 0 : index
    %127 = vector.load %arg9[%c1_63, %c0_64, %c0_65] : memref<2x16x16xf32, #tpu.memory_space<vmem>>, vector<1x16x16xf32>
    %128 = vector.shape_cast %127 : vector<1x16x16xf32> to vector<16x16xf32>
    %129 = vector.shape_cast %126 : vector<16x16xf32> to vector<1x16x16xf32>
    tpu.vector_store %arg9[%c1_63, %c0_64, %c0_65], %129 {strides = array<i32>} : memref<2x16x16xf32, #tpu.memory_space<vmem>>, vector<1x16x16xf32>,
    return
  }
  func.func @transform_0(%arg0: i32) -> (i32, i32, i32) {
    %c0_i32 = arith.constant 0 : i32
    %c0_i32_0 = arith.constant 0 : i32
    %c0_i32_1 = arith.constant 0 : i32
    return %arg0, %c0_i32, %c0_i32_0 : i32, i32, i32
  }
  func.func @transform_1(%arg0: i32) -> (i32, i32, i32) {
    %c0_i32 = arith.constant 0 : i32
    %c0_i32_0 = arith.constant 0 : i32
    %c0_i32_1 = arith.constant 0 : i32
    return %arg0, %c0_i32, %c0_i32_0 : i32, i32, i32
  }
  func.func @transform_2(%arg0: i32) -> (i32, i32) {
    %c0_i32 = arith.constant 0 : i32
    %c0_i32_0 = arith.constant 0 : i32
    %c0_i32_1 = arith.constant 0 : i32
    return %c0_i32, %c0_i32_0 : i32, i32
  }
  func.func @transform_3(%arg0: i32) -> (i32, i32) {
    %c0_i32 = arith.constant 0 : i32
    %c0_i32_0 = arith.constant 0 : i32
    %c0_i32_1 = arith.constant 0 : i32
    return %c0_i32, %c0_i32_0 : i32, i32
  }
  func.func @transform_4(%arg0: i32) -> (i32, i32) {
    %c0_i32 = arith.constant 0 : i32
    %c0_i32_0 = arith.constant 0 : i32
    %c0_i32_1 = arith.constant 0 : i32
    return %c0_i32, %c0_i32_0 : i32, i32
  }
  func.func @transform_5(%arg0: i32) -> (i32, i32) {
    %c0_i32 = arith.constant 0 : i32
    %c0_i32_0 = arith.constant 0 : i32
    %c0_i32_1 = arith.constant 0 : i32
    return %c0_i32, %c0_i32_0 : i32, i32
  }
  func.func @transform_6(%arg0: i32) -> (i32, i32) {
    %c0_i32 = arith.constant 0 : i32
    %c0_i32_0 = arith.constant 0 : i32
    %c0_i32_1 = arith.constant 0 : i32
    return %c0_i32, %c0_i32_0 : i32, i32
  }
  func.func @transform_7(%arg0: i32) -> (i32, i32) {
    %c0_i32 = arith.constant 0 : i32
    %c0_i32_0 = arith.constant 0 : i32
    %c0_i32_1 = arith.constant 0 : i32
    return %c0_i32, %c0_i32_0 : i32, i32
  }
  func.func @transform_8(%arg0: i32) -> (i32, i32, i32) {
    %c0_i32 = arith.constant 0 : i32
    %c0_i32_0 = arith.constant 0 : i32
    %c0_i32_1 = arith.constant 0 : i32
    return %arg0, %c0_i32, %c0_i32_0 : i32, i32, i32
  }
}

</mosaic_0001>

<llo_original>
// kernel: tpu_custom_call.1
$region0: #{tpu_custom_call.1}
  #allocation0 [shape = 'u32[]', space=smem, size = 0x4, offset = 0x4, fixed_abs, tag = 'smem constant byte address 0x4 - core index']
  #allocation1 [shape = 'u32[144,128]{1,0:T(1,128)}', space=vmem, size = 0x12000, scoped, tag = 'internal scratch']
  %s0 = inlined_call_operand.vmem [shape: s8[2,16,16], index: 0, kind: input, shape index: {}]
  %s1 = inlined_call_operand.vmem [shape: f32[2,16,8], index: 1, kind: input, shape index: {}]
  %s2 = inlined_call_operand.vmem [shape: bf16[32,8], index: 2, kind: input, shape index: {}]
  %s3 = inlined_call_operand.vmem [shape: f32[32,1], index: 3, kind: input, shape index: {}]
  %s4 = inlined_call_operand.vmem [shape: bf16[32,32], index: 4, kind: input, shape index: {}]
  %s5 = inlined_call_operand.vmem [shape: f32[32,1], index: 5, kind: input, shape index: {}]
  %s6 = inlined_call_operand.vmem [shape: bf16[16,32], index: 6, kind: input, shape index: {}]
  %s7 = inlined_call_operand.vmem [shape: f32[16,1], index: 7, kind: input, shape index: {}]
  %s8 = inlined_call_operand.hbm [shape: f32[2,16,16], index: 8, kind: output, shape index: {}]
  %s9 = sld [smem:[#allocation0]]
  $region42: #{tpu_custom_call.1} parent=0
    _
  %s11 = ssub.s32 1, %s9
  %s12 = scalar_select 0, %s11, %s9
  $region1: #{tpu_custom_call.1} parent=0
    #allocation2 [shape = 'u8[16384]{0}', space=vmem, size = 0x4000, scoped, tag = 'output window, operand 0, single buffered']
    #allocation3 [shape = 's32[1]{0}', space=sflag, size = 0x4, scoped, tag = 'scoped memory for tpu_custom_call.1']
    %13 = vsyncpa [#allocation3], 0
    // Predicated region
    $region2: #{tpu_custom_call.1} parent=1 // pred_check
      _
    $region3: #{tpu_custom_call.1} parent=1 // pred_check_branch
      %15 = sbr.rel (0) target = $region5
    $region4: #{tpu_custom_call.1} parent=1 // pred_region
      _
    $region5: #{tpu_custom_call.1} parent=1 // pred_fallthru
      _
    // Predicated region
    $region6: #{tpu_custom_call.1} parent=1 // pred_check
      _
    $region7: #{tpu_custom_call.1} parent=1 // pred_check_branch
      %17 = sbr.rel (0) target = $region9
    $region8: #{tpu_custom_call.1} parent=1 // pred_region
      _
    $region9: #{tpu_custom_call.1} parent=1 // pred_fallthru
      _
    // Predicated region
    $region10: #{tpu_custom_call.1} parent=1 // pred_check
      _
    $region11: #{tpu_custom_call.1} parent=1 // pred_check_branch
      %19 = sbr.rel (0) target = $region13
    $region12: #{tpu_custom_call.1} parent=1 // pred_region
      _
    $region13: #{tpu_custom_call.1} parent=1 // pred_fallthru
      _
    // Predicated region
    $region14: #{tpu_custom_call.1} parent=1 // pred_check
      _
    $region15: #{tpu_custom_call.1} parent=1 // pred_check_branch
      %21 = sbr.rel (0) target = $region17
    $region16: #{tpu_custom_call.1} parent=1 // pred_region
      _
    $region17: #{tpu_custom_call.1} parent=1 // pred_fallthru
      _
    // Predicated region
    $region18: #{tpu_custom_call.1} parent=1 // pred_check
      _
    $region19: #{tpu_custom_call.1} parent=1 // pred_check_branch
      %23 = sbr.rel (0) target = $region21
    $region20: #{tpu_custom_call.1} parent=1 // pred_region
      _
    $region21: #{tpu_custom_call.1} parent=1 // pred_fallthru
      _
    // Predicated region
    $region22: #{tpu_custom_call.1} parent=1 // pred_check
      _
    $region23: #{tpu_custom_call.1} parent=1 // pred_check_branch
      %25 = sbr.rel (0) target = $region25
    $region24: #{tpu_custom_call.1} parent=1 // pred_region
      _
    $region25: #{tpu_custom_call.1} parent=1 // pred_fallthru
      _
    // Predicated region
    $region26: #{tpu_custom_call.1} parent=1 // pred_check
      _
    $region27: #{tpu_custom_call.1} parent=1 // pred_check_branch
      %27 = sbr.rel (0) target = $region29
    $region28: #{tpu_custom_call.1} parent=1 // pred_region
      _
    $region29: #{tpu_custom_call.1} parent=1 // pred_fallthru
      _
    // Predicated region
    $region30: #{tpu_custom_call.1} parent=1 // pred_check
      _
    $region31: #{tpu_custom_call.1} parent=1 // pred_check_branch
      %29 = sbr.rel (0) target = $region33
    $region32: #{tpu_custom_call.1} parent=1 // pred_region
      _
    $region33: #{tpu_custom_call.1} parent=1 // pred_fallthru
      _
    %v33 = vld [vmem:[%s0] sm:$0x3]
    %v34 = vld [vmem:[%s0 + $0x2] sm:$0x3]
    %v35 = vlaneseq
    %v36 = vshrl.u32 %v35, 7
    %v37 = vadd.s32 %v36, 8
    %v38 = vlaneseq
    %v39 = vand.u32 %v38, 127
    %vm40 = vnez %v33
    %vm41 = vnez %v34
    %vm42 = vcmp.eq.s32.totalorder %v36, %v39
    %vm43 = vcmp.eq.s32.totalorder %v37, %v39
    %vm44 = vmpackc.low %vm42, %vm42
    %vm45 = vmpackc.even %vm44, %vm44
    %vm46 = vmpackc.low %vm43, %vm43
    %vm47 = vmpackc.even %vm46, %vm46
    %vm48 = vmor %vm40, %vm45
    %vm49 = vmor %vm41, %vm47
    %v50 = vsel %vm48, 16843009, 0
    %v51 = vsel %vm49, 16843009, 0
    %v52 = vunpack.c.0.s8 %v50
    %v53 = vunpack.c.0.s8 %v51
    %vm54 = vcmp.ne.s32.totalorder %v52, 0
    %vm55 = vcmp.ne.s32.totalorder %v53, 0
    %v56 = vsel %vm54, 1, 0
    %v57 = vsel %vm55, 1, 0
    %v58 = vcvt.s32.f32 %v56
    %v59 = vcvt.s32.f32 %v57
    %vm60 = vcmask 130048
    %v61 = vsel %vm60, %v58, 0.0
    %v62 = vsel %vm60, %v59, 0.0
    %v63 = vadd.f32 %v61, %v62
    %v64 = vrot.slane %v63, 4
    %v65 = vadd.f32 %v63, %v64
    %v66 = vrot.slane %v65, 2
    %v67 = vadd.f32 %v65, %v66
    %v68 = vrot.slane %v67, 1
    %v69 = vadd.f32 %v67, %v68
    %v70 = vrsqrt.pop %v69
    %v71 = vmul.f32 %v58, %v70
    %v72 = vmul.f32 %v59, %v70
    %73 = vxpose.xlu0.b32.start [1/16] %v70, 128
    %74 = vxpose.xlu0.b32.cont [2/16] 0.0, 128
    %75 = vxpose.xlu0.b32.cont [3/16] 0.0, 128
    %76 = vxpose.xlu0.b32.cont [4/16] 0.0, 128
    %77 = vxpose.xlu0.b32.cont [5/16] 0.0, 128
    %78 = vxpose.xlu0.b32.cont [6/16] 0.0, 128
    %79 = vxpose.xlu0.b32.cont [7/16] 0.0, 128
    %80 = vxpose.xlu0.b32.cont [8/16] 0.0, 128
    %81 = vxpose.xlu0.b32.cont [9/16] 0.0, 128
    %82 = vxpose.xlu0.b32.cont [10/16] 0.0, 128
    %83 = vxpose.xlu0.b32.cont [11/16] 0.0, 128
    %84 = vxpose.xlu0.b32.cont [12/16] 0.0, 128
    %85 = vxpose.xlu0.b32.cont [13/16] 0.0, 128
    %86 = vxpose.xlu0.b32.cont [14/16] 0.0, 128
    %87 = vxpose.xlu0.b32.cont [15/16] 0.0, 128
    %88 = vxpose.xlu0.b32.end [16/16] 0.0, 128
    %v89 = vpop.trf.xlu0
    %v90 = vpop.trf.xlu0
    %v91 = vpop.trf.xlu0
    %v92 = vpop.trf.xlu0
    %v93 = vpop.trf.xlu0
    %v94 = vpop.trf.xlu0
    %v95 = vpop.trf.xlu0
    %v96 = vpop.trf.xlu0
    %v97 = vpop.trf.xlu0
    %v98 = vpop.trf.xlu0
    %v99 = vpop.trf.xlu0
    %v100 = vpop.trf.xlu0
    %v101 = vpop.trf.xlu0
    %v102 = vpop.trf.xlu0
    %v103 = vpop.trf.xlu0
    %v104 = vpop.trf.xlu0
    %106 = vset.pattern.permute.xlu0 0
    %107 = vperm.xlu0 %106, %v89
    %v108 = vpop.permute.xlu0 %107
    %111 = vset.pattern.permute.xlu0 0
    %112 = vperm.xlu0 %111, %v90
    %v113 = vpop.permute.xlu0 %112
    %v115 = vmul.f32 %v71, %v108
    %v116 = vmul.f32 %v72, %v113
    %v117 = vpack.c.bf16 %v116, %v115
    %v118 = vld [vmem:[%s1] sm:$0xff]
    %v119 = vld [vmem:[%s1 + $0x8] sm:$0xff]
    %120 = vxpose.xlu0.b32.start [1/16] %v118, 128
    %121 = vxpose.xlu0.b32.cont [2/16] %v119, 128
    %122 = vxpose.xlu0.b32.cont [3/16] 0.0, 128
    %123 = vxpose.xlu0.b32.cont [4/16] 0.0, 128
    %124 = vxpose.xlu0.b32.cont [5/16] 0.0, 128
    %125 = vxpose.xlu0.b32.cont [6/16] 0.0, 128
    %126 = vxpose.xlu0.b32.cont [7/16] 0.0, 128
    %127 = vxpose.xlu0.b32.cont [8/16] 0.0, 128
    %128 = vxpose.xlu0.b32.cont [9/16] 0.0, 128
    %129 = vxpose.xlu0.b32.cont [10/16] 0.0, 128
    %130 = vxpose.xlu0.b32.cont [11/16] 0.0, 128
    %131 = vxpose.xlu0.b32.cont [12/16] 0.0, 128
    %132 = vxpose.xlu0.b32.cont [13/16] 0.0, 128
    %133 = vxpose.xlu0.b32.cont [14/16] 0.0, 128
    %134 = vxpose.xlu0.b32.cont [15/16] 0.0, 128
    %135 = vxpose.xlu0.b32.end [16/16] 0.0, 128
    %v136 = vpop.trf.xlu0
    %v137 = vpop.trf.xlu0
    %v138 = vpop.trf.xlu0
    %v139 = vpop.trf.xlu0
    %v140 = vpop.trf.xlu0
    %v141 = vpop.trf.xlu0
    %v142 = vpop.trf.xlu0
    %v143 = vpop.trf.xlu0
    %v144 = vpop.trf.xlu0
    %v145 = vpop.trf.xlu0
    %v146 = vpop.trf.xlu0
    %v147 = vpop.trf.xlu0
    %v148 = vpop.trf.xlu0
    %v149 = vpop.trf.xlu0
    %v150 = vpop.trf.xlu0
    %v151 = vpop.trf.xlu0
    %v152 = vld [vmem:[%s2] sm:$0xf]
    %v153 = vld [vmem:[%s2 + $0x4] sm:$0xf]
    %v154 = vld [vmem:[%s2 + $0x8] sm:$0xf]
    %v155 = vld [vmem:[%s2 + $0xc] sm:$0xf]
    %v156 = vld [vmem:[%s3] sm:$0xff]
    %v157 = vld [vmem:[%s3 + $0x8] sm:$0xff]
    %v158 = vld [vmem:[%s3 + $0x10] sm:$0xff]
    %v159 = vld [vmem:[%s3 + $0x18] sm:$0xff]
    %v160 = vpack.c.bf16 %v136, %v136
    %v162 = vsel %vm60, %v160, 0
    %164 = vmatprep.subr.bf16.mxu0 0
    %165 = vmatpush1.bf16.msra.mxu0 %v117
    %166 = vmatprep.subr.bf16.mxu0 0
    %167 = vmatpush1.bf16.msra.mxu0 0
    %168 = vmatprep.subr.bf16.mxu0 0
    %169 = vmatpush1.bf16.msra.mxu0 0
    %170 = vmatprep.subr.bf16.mxu0 0
    %171 = vmatpush1.bf16.msra.mxu0 0
    %172 = vmatprep.subr.bf16.mxu0 0
    %173 = vmatpush1.bf16.msra.mxu0 0
    %174 = vmatprep.subr.bf16.mxu0 0
    %175 = vmatpush1.bf16.msra.mxu0 0
    %176 = vmatprep.subr.bf16.mxu0 0
    %177 = vmatpush1.bf16.msra.mxu0 0
    %178 = vmatprep.subr.bf16.mxu0 0
    %179 = vmatpush1.bf16.msra.mxu0 0
    %180 = vmatprep.subr.bf16.mxu0 0
    %181 = vmatpush1.bf16.msra.mxu0 0
    %182 = vmatprep.subr.bf16.mxu0 0
    %183 = vmatpush1.bf16.msra.mxu0 0
    %184 = vmatprep.subr.bf16.mxu0 0
    %185 = vmatpush1.bf16.msra.mxu0 0
    %186 = vmatprep.subr.bf16.mxu0 0
    %187 = vmatpush1.bf16.msra.mxu0 0
    %188 = vmatprep.subr.bf16.mxu0 0
    %189 = vmatpush1.bf16.msra.mxu0 0
    %190 = vmatprep.subr.bf16.mxu0 0
    %191 = vmatpush1.bf16.msra.mxu0 0
    %192 = vmatprep.subr.bf16.mxu0 0
    %193 = vmatpush1.bf16.msra.mxu0 0
    %194 = vmatprep.subr.bf16.mxu0 0
    %195 = vmatpush1.bf16.msra.mxu0 0
    %196 = vmatprep.mubr.bf16.mxu0 0
    %197 = vmatmul.mubr.bf16.gmra.mrb[0].mxu0 %v162
    %v198 = vpop.f32.mrb[0].mxu0
    %v199 = vadd.f32 0.0, %v198
    %v200 = vpop.f32.mrb[0].mxu0
    %v201 = vpop.f32.mrb[0].mxu0
    %v202 = vpop.f32.mrb[0].mxu0
    %203 = vdwg.mxu0
    %v204 = vpack.c.bf16 %v199, %v199
    %206 = vset.pattern.permute.xlu0 0
    %207 = vperm.xlu0 %206, %v156
    %v208 = vpop.permute.xlu0 %207
    %211 = vset.pattern.permute.xlu0 0
    %212 = vperm.xlu0 %211, %v157
    %v213 = vpop.permute.xlu0 %212
    %216 = vset.pattern.permute.xlu0 0
    %217 = vperm.xlu0 %216, %v158
    %v218 = vpop.permute.xlu0 %217
    %221 = vset.pattern.permute.xlu0 0
    %222 = vperm.xlu0 %221, %v159
    %v223 = vpop.permute.xlu0 %222
    %v229 = vunpack.c.l.b16 %v152
    %v230 = vunpack.c.l.b16 %v153
    %v231 = vunpack.c.l.b16 %v154
    %v232 = vunpack.c.l.b16 %v155
    %v233 = vpack.c.b16 %v230, %v229
    %v234 = vpack.c.b16 %v232, %v231
    %vm235 = vcmask 64512
    %v237 = vsel %vm235, %v233, 0
    %v240 = vsel %vm235, %v234, 0
    %vm242 = vcmask 1043456
    %v244 = vsel %vm242, %v204, 0
    %246 = vmatprep.subr.bf16.mxu0 0
    %247 = vmatpush1.bf16.msra.mxu0 %v244
    %248 = vmatprep.subr.bf16.mxu0 0
    %249 = vmatpush1.bf16.msra.mxu0 0
    %250 = vmatprep.subr.bf16.mxu0 0
    %251 = vmatpush1.bf16.msra.mxu0 0
    %252 = vmatprep.subr.bf16.mxu0 0
    %253 = vmatpush1.bf16.msra.mxu0 0
    %254 = vmatprep.subr.bf16.mxu0 0
    %255 = vmatpush1.bf16.msra.mxu0 0
    %256 = vmatprep.subr.bf16.mxu0 0
    %257 = vmatpush1.bf16.msra.mxu0 0
    %258 = vmatprep.subr.bf16.mxu0 0
    %259 = vmatpush1.bf16.msra.mxu0 0
    %260 = vmatprep.subr.bf16.mxu0 0
    %261 = vmatpush1.bf16.msra.mxu0 0
    %262 = vmatprep.subr.bf16.mxu0 0
    %263 = vmatpush1.bf16.msra.mxu0 0
    %264 = vmatprep.subr.bf16.mxu0 0
    %265 = vmatpush1.bf16.msra.mxu0 0
    %266 = vmatprep.subr.bf16.mxu0 0
    %267 = vmatpush1.bf16.msra.mxu0 0
    %268 = vmatprep.subr.bf16.mxu0 0
    %269 = vmatpush1.bf16.msra.mxu0 0
    %270 = vmatprep.subr.bf16.mxu0 0
    %271 = vmatpush1.bf16.msra.mxu0 0
    %272 = vmatprep.subr.bf16.mxu0 0
    %273 = vmatpush1.bf16.msra.mxu0 0
    %274 = vmatprep.subr.bf16.mxu0 0
    %275 = vmatpush1.bf16.msra.mxu0 0
    %276 = vmatprep.subr.bf16.mxu0 0
    %277 = vmatpush1.bf16.msra.mxu0 0
    %278 = vmatprep.mubr.bf16.mxu0 0
    %279 = vmatmul.mubr.bf16.gmra.mrb[0].mxu0 %v237
    %v280 = vpop.f32.mrb[0].mxu0
    %v281 = vadd.f32 %v208, %v280
    %v282 = vpop.f32.mrb[0].mxu0
    %v283 = vpop.f32.mrb[0].mxu0
    %v284 = vadd.f32 %v213, %v283
    %v285 = vpop.f32.mrb[0].mxu0
    %286 = vmatprep.mubr.bf16.mxu0 0
    %287 = vmatmul.mubr.bf16.gmra.mrb[0].mxu0 %v240
    %v288 = vpop.f32.mrb[0].mxu0
    %v289 = vadd.f32 %v218, %v288
    %v290 = vpop.f32.mrb[0].mxu0
    %v291 = vpop.f32.mrb[0].mxu0
    %v292 = vadd.f32 %v223, %v291
    %v293 = vpop.f32.mrb[0].mxu0
    %294 = vdwg.mxu0
    %v295 = vmin.f32 %v281, 0.0
    %v296 = vmin.f32 %v284, 0.0
    %v297 = vmin.f32 %v289, 0.0
    %v298 = vmin.f32 %v292, 0.0
    %v299 = vmul.f32 %v295, 1.442695
    %v300 = vpow.pop %v299
    %v301 = vmul.f32 %v296, 1.442695
    %v302 = vpow.pop %v301
    %v303 = vmul.f32 %v297, 1.442695
    %v304 = vpow.pop %v303
    %v305 = vmul.f32 %v298, 1.442695
    %v306 = vpow.pop %v305
    %v307 = vsub.f32 %v300, 1.0
    %v308 = vsub.f32 %v302, 1.0
    %v309 = vsub.f32 %v304, 1.0
    %v310 = vsub.f32 %v306, 1.0
    %vm311 = vcmp.gt.f32.partialorder %v281, 0.0
    %vm312 = vcmp.gt.f32.partialorder %v284, 0.0
    %vm313 = vcmp.gt.f32.partialorder %v289, 0.0
    %vm314 = vcmp.gt.f32.partialorder %v292, 0.0
    %v315 = vsel %vm311, %v281, %v307
    %v316 = vsel %vm312, %v284, %v308
    %v317 = vsel %vm313, %v289, %v309
    %v318 = vsel %vm314, %v292, %v310
    %v319 = vld [vmem:[%s4] sm:$0xf]
    %v320 = vld [vmem:[%s4 + $0x4] sm:$0xf]
    %v321 = vld [vmem:[%s4 + $0x8] sm:$0xf]
    %v322 = vld [vmem:[%s4 + $0xc] sm:$0xf]
    %v323 = vld [vmem:[%s5] sm:$0xff]
    %v324 = vld [vmem:[%s5 + $0x8] sm:$0xff]
    %v325 = vld [vmem:[%s5 + $0x10] sm:$0xff]
    %v326 = vld [vmem:[%s5 + $0x18] sm:$0xff]
    %v327 = vpack.c.bf16 %v316, %v315
    %v328 = vpack.c.bf16 %v318, %v317
    %v333 = vunpack.c.l.b16 %v319
    %v334 = vunpack.c.l.b16 %v320
    %v335 = vunpack.c.l.b16 %v321
    %v336 = vunpack.c.l.b16 %v322
    %v337 = vpack.c.b16 %v334, %v333
    %v338 = vpack.c.b16 %v336, %v335
    %vm339 = vcmask 261120
    %v341 = vsel %vm339, %v337, 0
    %v344 = vsel %vm339, %v338, 0
    %346 = vmatprep.subr.bf16.mxu0 0
    %347 = vmatpush1.bf16.msra.mxu0 %v327
    %348 = vmatprep.subr.bf16.mxu0 0
    %349 = vmatpush1.bf16.msra.mxu0 %v328
    %350 = vmatprep.subr.bf16.mxu0 0
    %351 = vmatpush1.bf16.msra.mxu0 0
    %352 = vmatprep.subr.bf16.mxu0 0
    %353 = vmatpush1.bf16.msra.mxu0 0
    %354 = vmatprep.subr.bf16.mxu0 0
    %355 = vmatpush1.bf16.msra.mxu0 0
    %356 = vmatprep.subr.bf16.mxu0 0
    %357 = vmatpush1.bf16.msra.mxu0 0
    %358 = vmatprep.subr.bf16.mxu0 0
    %359 = vmatpush1.bf16.msra.mxu0 0
    %360 = vmatprep.subr.bf16.mxu0 0
    %361 = vmatpush1.bf16.msra.mxu0 0
    %362 = vmatprep.subr.bf16.mxu0 0
    %363 = vmatpush1.bf16.msra.mxu0 0
    %364 = vmatprep.subr.bf16.mxu0 0
    %365 = vmatpush1.bf16.msra.mxu0 0
    %366 = vmatprep.subr.bf16.mxu0 0
    %367 = vmatpush1.bf16.msra.mxu0 0
    %368 = vmatprep.subr.bf16.mxu0 0
    %369 = vmatpush1.bf16.msra.mxu0 0
    %370 = vmatprep.subr.bf16.mxu0 0
    %371 = vmatpush1.bf16.msra.mxu0 0
    %372 = vmatprep.subr.bf16.mxu0 0
    %373 = vmatpush1.bf16.msra.mxu0 0
    %374 = vmatprep.subr.bf16.mxu0 0
    %375 = vmatpush1.bf16.msra.mxu0 0
    %376 = vmatprep.subr.bf16.mxu0 0
    %377 = vmatpush1.bf16.msra.mxu0 0
    %378 = vmatprep.mubr.bf16.mxu0 0
    %379 = vmatmul.mubr.bf16.gmra.mrb[0].mxu0 %v341
    %v380 = vpop.f32.mrb[0].mxu0
    %v381 = vadd.f32 0.0, %v380
    %v382 = vpop.f32.mrb[0].mxu0
    %v383 = vpop.f32.mrb[0].mxu0
    %v384 = vadd.f32 0.0, %v383
    %v385 = vpop.f32.mrb[0].mxu0
    %386 = vmatprep.mubr.bf16.mxu0 0
    %387 = vmatmul.mubr.bf16.gmra.mrb[0].mxu0 %v344
    %v388 = vpop.f32.mrb[0].mxu0
    %v389 = vadd.f32 0.0, %v388
    %v390 = vpop.f32.mrb[0].mxu0
    %v391 = vpop.f32.mrb[0].mxu0
    %v392 = vadd.f32 0.0, %v391
    %v393 = vpop.f32.mrb[0].mxu0
    %394 = vdwg.mxu0
    %v395 = vpack.c.bf16 %v384, %v381
    %v396 = vpack.c.bf16 %v392, %v389
    %398 = vset.pattern.permute.xlu0 0
    %399 = vperm.xlu0 %398, %v323
    %v400 = vpop.permute.xlu0 %399
    %403 = vset.pattern.permute.xlu0 0
    %404 = vperm.xlu0 %403, %v324
    %v405 = vpop.permute.xlu0 %404
    %408 = vset.pattern.permute.xlu0 0
    %409 = vperm.xlu0 %408, %v325
    %v410 = vpop.permute.xlu0 %409
    %413 = vset.pattern.permute.xlu0 0
    %414 = vperm.xlu0 %413, %v326
    %v415 = vpop.permute.xlu0 %414
    %v418 = vsel %vm60, %v395, 0
    %v421 = vsel %vm60, %v396, 0
    %423 = vmatprep.subr.bf16.mxu0 0
    %424 = vmatpush1.bf16.msra.mxu0 %v117
    %425 = vmatprep.subr.bf16.mxu0 0
    %426 = vmatpush1.bf16.msra.mxu0 0
    %427 = vmatprep.subr.bf16.mxu0 0
    %428 = vmatpush1.bf16.msra.mxu0 0
    %429 = vmatprep.subr.bf16.mxu0 0
    %430 = vmatpush1.bf16.msra.mxu0 0
    %431 = vmatprep.subr.bf16.mxu0 0
    %432 = vmatpush1.bf16.msra.mxu0 0
    %433 = vmatprep.subr.bf16.mxu0 0
    %434 = vmatpush1.bf16.msra.mxu0 0
    %435 = vmatprep.subr.bf16.mxu0 0
    %436 = vmatpush1.bf16.msra.mxu0 0
    %437 = vmatprep.subr.bf16.mxu0 0
    %438 = vmatpush1.bf16.msra.mxu0 0
    %439 = vmatprep.subr.bf16.mxu0 0
    %440 = vmatpush1.bf16.msra.mxu0 0
    %441 = vmatprep.subr.bf16.mxu0 0
    %442 = vmatpush1.bf16.msra.mxu0 0
    %443 = vmatprep.subr.bf16.mxu0 0
    %444 = vmatpush1.bf16.msra.mxu0 0
    %445 = vmatprep.subr.bf16.mxu0 0
    %446 = vmatpush1.bf16.msra.mxu0 0
    %447 = vmatprep.subr.bf16.mxu0 0
    %448 = vmatpush1.bf16.msra.mxu0 0
    %449 = vmatprep.subr.bf16.mxu0 0
    %450 = vmatpush1.bf16.msra.mxu0 0
    %451 = vmatprep.subr.bf16.mxu0 0
    %452 = vmatpush1.bf16.msra.mxu0 0
    %453 = vmatprep.subr.bf16.mxu0 0
    %454 = vmatpush1.bf16.msra.mxu0 0
    %455 = vmatprep.mubr.bf16.mxu0 0
    %456 = vmatmul.mubr.bf16.gmra.mrb[0].mxu0 %v418
    %v457 = vpop.f32.mrb[0].mxu0
    %v458 = vadd.f32 %v400, %v457
    %v459 = vpop.f32.mrb[0].mxu0
    %v460 = vpop.f32.mrb[0].mxu0
    %v461 = vadd.f32 %v405, %v460
    %v462 = vpop.f32.mrb[0].mxu0
    %463 = vmatprep.mubr.bf16.mxu0 0
    %464 = vmatmul.mubr.bf16.gmra.mrb[0].mxu0 %v421
    %v465 = vpop.f32.mrb[0].mxu0
    %v466 = vadd.f32 %v410, %v465
    %v467 = vpop.f32.mrb[0].mxu0
    %v468 = vpop.f32.mrb[0].mxu0
    %v469 = vadd.f32 %v415, %v468
    %v470 = vpop.f32.mrb[0].mxu0
    %471 = vdwg.mxu0
    %v472 = vmin.f32 %v458, 0.0
    %v473 = vmin.f32 %v461, 0.0
    %v474 = vmin.f32 %v466, 0.0
    %v475 = vmin.f32 %v469, 0.0
    %v476 = vmul.f32 %v472, 1.442695
    %v477 = vpow.pop %v476
    %v478 = vmul.f32 %v473, 1.442695
    %v479 = vpow.pop %v478
    %v480 = vmul.f32 %v474, 1.442695
    %v481 = vpow.pop %v480
    %v482 = vmul.f32 %v475, 1.442695
    %v483 = vpow.pop %v482
    %v484 = vsub.f32 %v477, 1.0
    %v485 = vsub.f32 %v479, 1.0
    %v486 = vsub.f32 %v481, 1.0
    %v487 = vsub.f32 %v483, 1.0
    %vm488 = vcmp.gt.f32.partialorder %v458, 0.0
    %vm489 = vcmp.gt.f32.partialorder %v461, 0.0
    %vm490 = vcmp.gt.f32.partialorder %v466, 0.0
    %vm491 = vcmp.gt.f32.partialorder %v469, 0.0
    %v492 = vsel %vm488, %v458, %v484
    %v493 = vsel %vm489, %v461, %v485
    %v494 = vsel %vm490, %v466, %v486
    %v495 = vsel %vm491, %v469, %v487
    %v496 = vld [vmem:[%s6] sm:$0xf]
    %v497 = vld [vmem:[%s6 + $0x4] sm:$0xf]
    %v498 = vld [vmem:[%s7] sm:$0xff]
    %v499 = vld [vmem:[%s7 + $0x8] sm:$0xff]
    %v500 = vpack.c.bf16 %v493, %v492
    %v501 = vpack.c.bf16 %v495, %v494
    %v504 = vunpack.c.l.b16 %v496
    %v505 = vunpack.c.l.b16 %v497
    %v506 = vpack.c.b16 %v505, %v504
    %v508 = vsel %vm339, %v506, 0
    %510 = vmatprep.subr.bf16.mxu0 0
    %511 = vmatpush1.bf16.msra.mxu0 %v500
    %512 = vmatprep.subr.bf16.mxu0 0
    %513 = vmatpush1.bf16.msra.mxu0 %v501
    %514 = vmatprep.subr.bf16.mxu0 0
    %515 = vmatpush1.bf16.msra.mxu0 0
    %516 = vmatprep.subr.bf16.mxu0 0
    %517 = vmatpush1.bf16.msra.mxu0 0
    %518 = vmatprep.subr.bf16.mxu0 0
    %519 = vmatpush1.bf16.msra.mxu0 0
    %520 = vmatprep.subr.bf16.mxu0 0
    %521 = vmatpush1.bf16.msra.mxu0 0
    %522 = vmatprep.subr.bf16.mxu0 0
    %523 = vmatpush1.bf16.msra.mxu0 0
    %524 = vmatprep.subr.bf16.mxu0 0
    %525 = vmatpush1.bf16.msra.mxu0 0
    %526 = vmatprep.subr.bf16.mxu0 0
    %527 = vmatpush1.bf16.msra.mxu0 0
    %528 = vmatprep.subr.bf16.mxu0 0
    %529 = vmatpush1.bf16.msra.mxu0 0
    %530 = vmatprep.subr.bf16.mxu0 0
    %531 = vmatpush1.bf16.msra.mxu0 0
    %532 = vmatprep.subr.bf16.mxu0 0
    %533 = vmatpush1.bf16.msra.mxu0 0
    %534 = vmatprep.subr.bf16.mxu0 0
    %535 = vmatpush1.bf16.msra.mxu0 0
    %536 = vmatprep.subr.bf16.mxu0 0
    %537 = vmatpush1.bf16.msra.mxu0 0
    %538 = vmatprep.subr.bf16.mxu0 0
    %539 = vmatpush1.bf16.msra.mxu0 0
    %540 = vmatprep.subr.bf16.mxu0 0
    %541 = vmatpush1.bf16.msra.mxu0 0
    %542 = vmatprep.mubr.bf16.mxu0 0
    %543 = vmatmul.mubr.bf16.gmra.mrb[0].mxu0 %v508
    %v544 = vpop.f32.mrb[0].mxu0
    %v545 = vadd.f32 0.0, %v544
    %v546 = vpop.f32.mrb[0].mxu0
    %v547 = vpop.f32.mrb[0].mxu0
    %v548 = vadd.f32 0.0, %v547
    %v549 = vpop.f32.mrb[0].mxu0
    %550 = vdwg.mxu0
    %v551 = vpack.c.bf16 %v548, %v545
    %553 = vset.pattern.permute.xlu0 0
    %554 = vperm.xlu0 %553, %v498
    %v555 = vpop.permute.xlu0 %554
    %558 = vset.pattern.permute.xlu0 0
    %559 = vperm.xlu0 %558, %v499
    %v560 = vpop.permute.xlu0 %559
    %v563 = vsel %vm60, %v551, 0
    %565 = vmatprep.subr.bf16.mxu0 0
    %566 = vmatpush1.bf16.msra.mxu0 %v117
    %567 = vmatprep.subr.bf16.mxu0 0
    %568 = vmatpush1.bf16.msra.mxu0 0
    %569 = vmatprep.subr.bf16.mxu0 0
    %570 = vmatpush1.bf16.msra.mxu0 0
    %571 = vmatprep.subr.bf16.mxu0 0
    %572 = vmatpush1.bf16.msra.mxu0 0
    %573 = vmatprep.subr.bf16.mxu0 0
    %574 = vmatpush1.bf16.msra.mxu0 0
    %575 = vmatprep.subr.bf16.mxu0 0
    %576 = vmatpush1.bf16.msra.mxu0 0
    %577 = vmatprep.subr.bf16.mxu0 0
    %578 = vmatpush1.bf16.msra.mxu0 0
    %579 = vmatprep.subr.bf16.mxu0 0
    %580 = vmatpush1.bf16.msra.mxu0 0
    %581 = vmatprep.subr.bf16.mxu0 0
    %582 = vmatpush1.bf16.msra.mxu0 0
    %583 = vmatprep.subr.bf16.mxu0 0
    %584 = vmatpush1.bf16.msra.mxu0 0
    %585 = vmatprep.subr.bf16.mxu0 0
    %586 = vmatpush1.bf16.msra.mxu0 0
    %587 = vmatprep.subr.bf16.mxu0 0
    %588 = vmatpush1.bf16.msra.mxu0 0
    %589 = vmatprep.subr.bf16.mxu0 0
    %590 = vmatpush1.bf16.msra.mxu0 0
    %591 = vmatprep.subr.bf16.mxu0 0
    %592 = vmatpush1.bf16.msra.mxu0 0
    %593 = vmatprep.subr.bf16.mxu0 0
    %594 = vmatpush1.bf16.msra.mxu0 0
    %595 = vmatprep.subr.bf16.mxu0 0
    %596 = vmatpush1.bf16.msra.mxu0 0
    %597 = vmatprep.mubr.bf16.mxu0 0
    %598 = vmatmul.mubr.bf16.gmra.mrb[0].mxu0 %v563
    %v599 = vpop.f32.mrb[0].mxu0
    %v600 = vadd.f32 %v555, %v599
    %v601 = vpop.f32.mrb[0].mxu0
    %v602 = vpop.f32.mrb[0].mxu0
    %v603 = vadd.f32 %v560, %v602
    %v604 = vpop.f32.mrb[0].mxu0
    %605 = vdwg.mxu0
    %606 = vst.msk [vmem:[#allocation2] sm:$0xff] %vm60, %v600
    %607 = vst.msk [vmem:[#allocation2 + $0x8] sm:$0xff] %vm60, %v603
    %s608 = scalar_lea.vmem %s0, 4
    %v609 = vld [vmem:[%s608] sm:$0x3]
    %v610 = vld [vmem:[%s608 + $0x2] sm:$0x3]
    %vm611 = vnez %v609
    %vm612 = vnez %v610
    %vm613 = vmor %vm611, %vm45
    %vm614 = vmor %vm612, %vm47
    %v615 = vsel %vm613, 16843009, 0
    %v616 = vsel %vm614, 16843009, 0
    %v617 = vunpack.c.0.s8 %v615
    %v618 = vunpack.c.0.s8 %v616
    %vm619 = vcmp.ne.s32.totalorder %v617, 0
    %vm620 = vcmp.ne.s32.totalorder %v618, 0
    %v621 = vsel %vm619, 1, 0
    %v622 = vsel %vm620, 1, 0
    %v623 = vcvt.s32.f32 %v621
    %v624 = vcvt.s32.f32 %v622
    %v625 = vsel %vm60, %v623, 0.0
    %v626 = vsel %vm60, %v624, 0.0
    %v627 = vadd.f32 %v625, %v626
    %v628 = vrot.slane %v627, 4
    %v629 = vadd.f32 %v627, %v628
    %v630 = vrot.slane %v629, 2
    %v631 = vadd.f32 %v629, %v630
    %v632 = vrot.slane %v631, 1
    %v633 = vadd.f32 %v631, %v632
    %v634 = vrsqrt.pop %v633
    %v635 = vmul.f32 %v623, %v634
    %v636 = vmul.f32 %v624, %v634
    %637 = vxpose.xlu0.b32.start [1/16] %v634, 128
    %638 = vxpose.xlu0.b32.cont [2/16] 0.0, 128
    %639 = vxpose.xlu0.b32.cont [3/16] 0.0, 128
    %640 = vxpose.xlu0.b32.cont [4/16] 0.0, 128
    %641 = vxpose.xlu0.b32.cont [5/16] 0.0, 128
    %642 = vxpose.xlu0.b32.cont [6/16] 0.0, 128
    %643 = vxpose.xlu0.b32.cont [7/16] 0.0, 128
    %644 = vxpose.xlu0.b32.cont [8/16] 0.0, 128
    %645 = vxpose.xlu0.b32.cont [9/16] 0.0, 128
    %646 = vxpose.xlu0.b32.cont [10/16] 0.0, 128
    %647 = vxpose.xlu0.b32.cont [11/16] 0.0, 128
    %648 = vxpose.xlu0.b32.cont [12/16] 0.0, 128
    %649 = vxpose.xlu0.b32.cont [13/16] 0.0, 128
    %650 = vxpose.xlu0.b32.cont [14/16] 0.0, 128
    %651 = vxpose.xlu0.b32.cont [15/16] 0.0, 128
    %652 = vxpose.xlu0.b32.end [16/16] 0.0, 128
    %v653 = vpop.trf.xlu0
    %v654 = vpop.trf.xlu0
    %v655 = vpop.trf.xlu0
    %v656 = vpop.trf.xlu0
    %v657 = vpop.trf.xlu0
    %v658 = vpop.trf.xlu0
    %v659 = vpop.trf.xlu0
    %v660 = vpop.trf.xlu0
    %v661 = vpop.trf.xlu0
    %v662 = vpop.trf.xlu0
    %v663 = vpop.trf.xlu0
    %v664 = vpop.trf.xlu0
    %v665 = vpop.trf.xlu0
    %v666 = vpop.trf.xlu0
    %v667 = vpop.trf.xlu0
    %v668 = vpop.trf.xlu0
    %670 = vset.pattern.permute.xlu0 0
    %671 = vperm.xlu0 %670, %v653
    %v672 = vpop.permute.xlu0 %671
    %675 = vset.pattern.permute.xlu0 0
    %676 = vperm.xlu0 %675, %v654
    %v677 = vpop.permute.xlu0 %676
    %v679 = vmul.f32 %v635, %v672
    %v680 = vmul.f32 %v636, %v677
    %v681 = vpack.c.bf16 %v680, %v679
    %s682 = scalar_lea.vmem %s1, 16
    %v683 = vld [vmem:[%s682] sm:$0xff]
    %v684 = vld [vmem:[%s682 + $0x8] sm:$0xff]
    %685 = vxpose.xlu0.b32.start [1/16] %v683, 128
    %686 = vxpose.xlu0.b32.cont [2/16] %v684, 128
    %687 = vxpose.xlu0.b32.cont [3/16] 0.0, 128
    %688 = vxpose.xlu0.b32.cont [4/16] 0.0, 128
    %689 = vxpose.xlu0.b32.cont [5/16] 0.0, 128
    %690 = vxpose.xlu0.b32.cont [6/16] 0.0, 128
    %691 = vxpose.xlu0.b32.cont [7/16] 0.0, 128
    %692 = vxpose.xlu0.b32.cont [8/16] 0.0, 128
    %693 = vxpose.xlu0.b32.cont [9/16] 0.0, 128
    %694 = vxpose.xlu0.b32.cont [10/16] 0.0, 128
    %695 = vxpose.xlu0.b32.cont [11/16] 0.0, 128
    %696 = vxpose.xlu0.b32.cont [12/16] 0.0, 128
    %697 = vxpose.xlu0.b32.cont [13/16] 0.0, 128
    %698 = vxpose.xlu0.b32.cont [14/16] 0.0, 128
    %699 = vxpose.xlu0.b32.cont [15/16] 0.0, 128
    %700 = vxpose.xlu0.b32.end [16/16] 0.0, 128
    %v701 = vpop.trf.xlu0
    %v702 = vpop.trf.xlu0
    %v703 = vpop.trf.xlu0
    %v704 = vpop.trf.xlu0
    %v705 = vpop.trf.xlu0
    %v706 = vpop.trf.xlu0
    %v707 = vpop.trf.xlu0
    %v708 = vpop.trf.xlu0
    %v709 = vpop.trf.xlu0
    %v710 = vpop.trf.xlu0
    %v711 = vpop.trf.xlu0
    %v712 = vpop.trf.xlu0
    %v713 = vpop.trf.xlu0
    %v714 = vpop.trf.xlu0
    %v715 = vpop.trf.xlu0
    %v716 = vpop.trf.xlu0
    %v717 = vld [vmem:[%s2] sm:$0xf]
    %v718 = vld [vmem:[%s2 + $0x4] sm:$0xf]
    %v719 = vld [vmem:[%s2 + $0x8] sm:$0xf]
    %v720 = vld [vmem:[%s2 + $0xc] sm:$0xf]
    %v721 = vld [vmem:[%s3] sm:$0xff]
    %v722 = vld [vmem:[%s3 + $0x8] sm:$0xff]
    %v723 = vld [vmem:[%s3 + $0x10] sm:$0xff]
    %v724 = vld [vmem:[%s3 + $0x18] sm:$0xff]
    %v725 = vpack.c.bf16 %v701, %v701
    %v727 = vsel %vm60, %v725, 0
    %729 = vmatprep.subr.bf16.mxu0 0
    %730 = vmatpush1.bf16.msra.mxu0 %v681
    %731 = vmatprep.subr.bf16.mxu0 0
    %732 = vmatpush1.bf16.msra.mxu0 0
    %733 = vmatprep.subr.bf16.mxu0 0
    %734 = vmatpush1.bf16.msra.mxu0 0
    %735 = vmatprep.subr.bf16.mxu0 0
    %736 = vmatpush1.bf16.msra.mxu0 0
    %737 = vmatprep.subr.bf16.mxu0 0
    %738 = vmatpush1.bf16.msra.mxu0 0
    %739 = vmatprep.subr.bf16.mxu0 0
    %740 = vmatpush1.bf16.msra.mxu0 0
    %741 = vmatprep.subr.bf16.mxu0 0
    %742 = vmatpush1.bf16.msra.mxu0 0
    %743 = vmatprep.subr.bf16.mxu0 0
    %744 = vmatpush1.bf16.msra.mxu0 0
    %745 = vmatprep.subr.bf16.mxu0 0
    %746 = vmatpush1.bf16.msra.mxu0 0
    %747 = vmatprep.subr.bf16.mxu0 0
    %748 = vmatpush1.bf16.msra.mxu0 0
    %749 = vmatprep.subr.bf16.mxu0 0
    %750 = vmatpush1.bf16.msra.mxu0 0
    %751 = vmatprep.subr.bf16.mxu0 0
    %752 = vmatpush1.bf16.msra.mxu0 0
    %753 = vmatprep.subr.bf16.mxu0 0
    %754 = vmatpush1.bf16.msra.mxu0 0
    %755 = vmatprep.subr.bf16.mxu0 0
    %756 = vmatpush1.bf16.msra.mxu0 0
    %757 = vmatprep.subr.bf16.mxu0 0
    %758 = vmatpush1.bf16.msra.mxu0 0
    %759 = vmatprep.subr.bf16.mxu0 0
    %760 = vmatpush1.bf16.msra.mxu0 0
    %761 = vmatprep.mubr.bf16.mxu0 0
    %762 = vmatmul.mubr.bf16.gmra.mrb[0].mxu0 %v727
    %v763 = vpop.f32.mrb[0].mxu0
    %v764 = vadd.f32 0.0, %v763
    %v765 = vpop.f32.mrb[0].mxu0
    %v766 = vpop.f32.mrb[0].mxu0
    %v767 = vpop.f32.mrb[0].mxu0
    %768 = vdwg.mxu0
    %v769 = vpack.c.bf16 %v764, %v764
    %771 = vset.pattern.permute.xlu0 0
    %772 = vperm.xlu0 %771, %v721
    %v773 = vpop.permute.xlu0 %772
    %776 = vset.pattern.permute.xlu0 0
    %777 = vperm.xlu0 %776, %v722
    %v778 = vpop.permute.xlu0 %777
    %781 = vset.pattern.permute.xlu0 0
    %782 = vperm.xlu0 %781, %v723
    %v783 = vpop.permute.xlu0 %782
    %786 = vset.pattern.permute.xlu0 0
    %787 = vperm.xlu0 %786, %v724
    %v788 = vpop.permute.xlu0 %787
    %v794 = vunpack.c.l.b16 %v717
    %v795 = vunpack.c.l.b16 %v718
    %v796 = vunpack.c.l.b16 %v719
    %v797 = vunpack.c.l.b16 %v720
    %v798 = vpack.c.b16 %v795, %v794
    %v799 = vpack.c.b16 %v797, %v796
    %v801 = vsel %vm235, %v798, 0
    %v804 = vsel %vm235, %v799, 0
    %v807 = vsel %vm242, %v769, 0
    %809 = vmatprep.subr.bf16.mxu0 0
    %810 = vmatpush1.bf16.msra.mxu0 %v807
    %811 = vmatprep.subr.bf16.mxu0 0
    %812 = vmatpush1.bf16.msra.mxu0 0
    %813 = vmatprep.subr.bf16.mxu0 0
    %814 = vmatpush1.bf16.msra.mxu0 0
    %815 = vmatprep.subr.bf16.mxu0 0
    %816 = vmatpush1.bf16.msra.mxu0 0
    %817 = vmatprep.subr.bf16.mxu0 0
    %818 = vmatpush1.bf16.msra.mxu0 0
    %819 = vmatprep.subr.bf16.mxu0 0
    %820 = vmatpush1.bf16.msra.mxu0 0
    %821 = vmatprep.subr.bf16.mxu0 0
    %822 = vmatpush1.bf16.msra.mxu0 0
    %823 = vmatprep.subr.bf16.mxu0 0
    %824 = vmatpush1.bf16.msra.mxu0 0
    %825 = vmatprep.subr.bf16.mxu0 0
    %826 = vmatpush1.bf16.msra.mxu0 0
    %827 = vmatprep.subr.bf16.mxu0 0
    %828 = vmatpush1.bf16.msra.mxu0 0
    %829 = vmatprep.subr.bf16.mxu0 0
    %830 = vmatpush1.bf16.msra.mxu0 0
    %831 = vmatprep.subr.bf16.mxu0 0
    %832 = vmatpush1.bf16.msra.mxu0 0
    %833 = vmatprep.subr.bf16.mxu0 0
    %834 = vmatpush1.bf16.msra.mxu0 0
    %835 = vmatprep.subr.bf16.mxu0 0
    %836 = vmatpush1.bf16.msra.mxu0 0
    %837 = vmatprep.subr.bf16.mxu0 0
    %838 = vmatpush1.bf16.msra.mxu0 0
    %839 = vmatprep.subr.bf16.mxu0 0
    %840 = vmatpush1.bf16.msra.mxu0 0
    %841 = vmatprep.mubr.bf16.mxu0 0
    %842 = vmatmul.mubr.bf16.gmra.mrb[0].mxu0 %v801
    %v843 = vpop.f32.mrb[0].mxu0
    %v844 = vadd.f32 %v773, %v843
    %v845 = vpop.f32.mrb[0].mxu0
    %v846 = vpop.f32.mrb[0].mxu0
    %v847 = vadd.f32 %v778, %v846
    %v848 = vpop.f32.mrb[0].mxu0
    %849 = vmatprep.mubr.bf16.mxu0 0
    %850 = vmatmul.mubr.bf16.gmra.mrb[0].mxu0 %v804
    %v851 = vpop.f32.mrb[0].mxu0
    %v852 = vadd.f32 %v783, %v851
    %v853 = vpop.f32.mrb[0].mxu0
    %v854 = vpop.f32.mrb[0].mxu0
    %v855 = vadd.f32 %v788, %v854
    %v856 = vpop.f32.mrb[0].mxu0
    %857 = vdwg.mxu0
    %v858 = vmin.f32 %v844, 0.0
    %v859 = vmin.f32 %v847, 0.0
    %v860 = vmin.f32 %v852, 0.0
    %v861 = vmin.f32 %v855, 0.0
    %v862 = vmul.f32 %v858, 1.442695
    %v863 = vpow.pop %v862
    %v864 = vmul.f32 %v859, 1.442695
    %v865 = vpow.pop %v864
    %v866 = vmul.f32 %v860, 1.442695
    %v867 = vpow.pop %v866
    %v868 = vmul.f32 %v861, 1.442695
    %v869 = vpow.pop %v868
    %v870 = vsub.f32 %v863, 1.0
    %v871 = vsub.f32 %v865, 1.0
    %v872 = vsub.f32 %v867, 1.0
    %v873 = vsub.f32 %v869, 1.0
    %vm874 = vcmp.gt.f32.partialorder %v844, 0.0
    %vm875 = vcmp.gt.f32.partialorder %v847, 0.0
    %vm876 = vcmp.gt.f32.partialorder %v852, 0.0
    %vm877 = vcmp.gt.f32.partialorder %v855, 0.0
    %v878 = vsel %vm874, %v844, %v870
    %v879 = vsel %vm875, %v847, %v871
    %v880 = vsel %vm876, %v852, %v872
    %v881 = vsel %vm877, %v855, %v873
    %v882 = vld [vmem:[%s4] sm:$0xf]
    %v883 = vld [vmem:[%s4 + $0x4] sm:$0xf]
    %v884 = vld [vmem:[%s4 + $0x8] sm:$0xf]
    %v885 = vld [vmem:[%s4 + $0xc] sm:$0xf]
    %v886 = vld [vmem:[%s5] sm:$0xff]
    %v887 = vld [vmem:[%s5 + $0x8] sm:$0xff]
    %v888 = vld [vmem:[%s5 + $0x10] sm:$0xff]
    %v889 = vld [vmem:[%s5 + $0x18] sm:$0xff]
    %v890 = vpack.c.bf16 %v879, %v878
    %v891 = vpack.c.bf16 %v881, %v880
    %v896 = vunpack.c.l.b16 %v882
    %v897 = vunpack.c.l.b16 %v883
    %v898 = vunpack.c.l.b16 %v884
    %v899 = vunpack.c.l.b16 %v885
    %v900 = vpack.c.b16 %v897, %v896
    %v901 = vpack.c.b16 %v899, %v898
    %v903 = vsel %vm339, %v900, 0
    %v906 = vsel %vm339, %v901, 0
    %908 = vmatprep.subr.bf16.mxu0 0
    %909 = vmatpush1.bf16.msra.mxu0 %v890
    %910 = vmatprep.subr.bf16.mxu0 0
    %911 = vmatpush1.bf16.msra.mxu0 %v891
    %912 = vmatprep.subr.bf16.mxu0 0
    %913 = vmatpush1.bf16.msra.mxu0 0
    %914 = vmatprep.subr.bf16.mxu0 0
    %915 = vmatpush1.bf16.msra.mxu0 0
    %916 = vmatprep.subr.bf16.mxu0 0
    %917 = vmatpush1.bf16.msra.mxu0 0
    %918 = vmatprep.subr.bf16.mxu0 0
    %919 = vmatpush1.bf16.msra.mxu0 0
    %920 = vmatprep.subr.bf16.mxu0 0
    %921 = vmatpush1.bf16.msra.mxu0 0
    %922 = vmatprep.subr.bf16.mxu0 0
    %923 = vmatpush1.bf16.msra.mxu0 0
    %924 = vmatprep.subr.bf16.mxu0 0
    %925 = vmatpush1.bf16.msra.mxu0 0
    %926 = vmatprep.subr.bf16.mxu0 0
    %927 = vmatpush1.bf16.msra.mxu0 0
    %928 = vmatprep.subr.bf16.mxu0 0
    %929 = vmatpush1.bf16.msra.mxu0 0
    %930 = vmatprep.subr.bf16.mxu0 0
    %931 = vmatpush1.bf16.msra.mxu0 0
    %932 = vmatprep.subr.bf16.mxu0 0
    %933 = vmatpush1.bf16.msra.mxu0 0
    %934 = vmatprep.subr.bf16.mxu0 0
    %935 = vmatpush1.bf16.msra.mxu0 0
    %936 = vmatprep.subr.bf16.mxu0 0
    %937 = vmatpush1.bf16.msra.mxu0 0
    %938 = vmatprep.subr.bf16.mxu0 0
    %939 = vmatpush1.bf16.msra.mxu0 0
    %940 = vmatprep.mubr.bf16.mxu0 0
    %941 = vmatmul.mubr.bf16.gmra.mrb[0].mxu0 %v903
    %v942 = vpop.f32.mrb[0].mxu0
    %v943 = vadd.f32 0.0, %v942
    %v944 = vpop.f32.mrb[0].mxu0
    %v945 = vpop.f32.mrb[0].mxu0
    %v946 = vadd.f32 0.0, %v945
    %v947 = vpop.f32.mrb[0].mxu0
    %948 = vmatprep.mubr.bf16.mxu0 0
    %949 = vmatmul.mubr.bf16.gmra.mrb[0].mxu0 %v906
    %v950 = vpop.f32.mrb[0].mxu0
    %v951 = vadd.f32 0.0, %v950
    %v952 = vpop.f32.mrb[0].mxu0
    %v953 = vpop.f32.mrb[0].mxu0
    %v954 = vadd.f32 0.0, %v953
    %v955 = vpop.f32.mrb[0].mxu0
    %956 = vdwg.mxu0
    %v957 = vpack.c.bf16 %v946, %v943
    %v958 = vpack.c.bf16 %v954, %v951
    %960 = vset.pattern.permute.xlu0 0
    %961 = vperm.xlu0 %960, %v886
    %v962 = vpop.permute.xlu0 %961
    %965 = vset.pattern.permute.xlu0 0
    %966 = vperm.xlu0 %965, %v887
    %v967 = vpop.permute.xlu0 %966
    %970 = vset.pattern.permute.xlu0 0
    %971 = vperm.xlu0 %970, %v888
    %v972 = vpop.permute.xlu0 %971
    %975 = vset.pattern.permute.xlu0 0
    %976 = vperm.xlu0 %975, %v889
    %v977 = vpop.permute.xlu0 %976
    %v980 = vsel %vm60, %v957, 0
    %v983 = vsel %vm60, %v958, 0
    %985 = vmatprep.subr.bf16.mxu0 0
    %986 = vmatpush1.bf16.msra.mxu0 %v681
    %987 = vmatprep.subr.bf16.mxu0 0
    %988 = vmatpush1.bf16.msra.mxu0 0
    %989 = vmatprep.subr.bf16.mxu0 0
    %990 = vmatpush1.bf16.msra.mxu0 0
    %991 = vmatprep.subr.bf16.mxu0 0
    %992 = vmatpush1.bf16.msra.mxu0 0
    %993 = vmatprep.subr.bf16.mxu0 0
    %994 = vmatpush1.bf16.msra.mxu0 0
    %995 = vmatprep.subr.bf16.mxu0 0
    %996 = vmatpush1.bf16.msra.mxu0 0
    %997 = vmatprep.subr.bf16.mxu0 0
    %998 = vmatpush1.bf16.msra.mxu0 0
    %999 = vmatprep.subr.bf16.mxu0 0
    %1000 = vmatpush1.bf16.msra.mxu0 0
    %1001 = vmatprep.subr.bf16.mxu0 0
    %1002 = vmatpush1.bf16.msra.mxu0 0
    %1003 = vmatprep.subr.bf16.mxu0 0
    %1004 = vmatpush1.bf16.msra.mxu0 0
    %1005 = vmatprep.subr.bf16.mxu0 0
    %1006 = vmatpush1.bf16.msra.mxu0 0
    %1007 = vmatprep.subr.bf16.mxu0 0
    %1008 = vmatpush1.bf16.msra.mxu0 0
    %1009 = vmatprep.subr.bf16.mxu0 0
    %1010 = vmatpush1.bf16.msra.mxu0 0
    %1011 = vmatprep.subr.bf16.mxu0 0
    %1012 = vmatpush1.bf16.msra.mxu0 0
    %1013 = vmatprep.subr.bf16.mxu0 0
    %1014 = vmatpush1.bf16.msra.mxu0 0
    %1015 = vmatprep.subr.bf16.mxu0 0
    %1016 = vmatpush1.bf16.msra.mxu0 0
    %1017 = vmatprep.mubr.bf16.mxu0 0
    %1018 = vmatmul.mubr.bf16.gmra.mrb[0].mxu0 %v980
    %v1019 = vpop.f32.mrb[0].mxu0
    %v1020 = vadd.f32 %v962, %v1019
    %v1021 = vpop.f32.mrb[0].mxu0
    %v1022 = vpop.f32.mrb[0].mxu0
    %v1023 = vadd.f32 %v967, %v1022
    %v1024 = vpop.f32.mrb[0].mxu0
    %1025 = vmatprep.mubr.bf16.mxu0 0
    %1026 = vmatmul.mubr.bf16.gmra.mrb[0].mxu0 %v983
    %v1027 = vpop.f32.mrb[0].mxu0
    %v1028 = vadd.f32 %v972, %v1027
    %v1029 = vpop.f32.mrb[0].mxu0
    %v1030 = vpop.f32.mrb[0].mxu0
    %v1031 = vadd.f32 %v977, %v1030
    %v1032 = vpop.f32.mrb[0].mxu0
    %1033 = vdwg.mxu0
    %v1034 = vmin.f32 %v1020, 0.0
    %v1035 = vmin.f32 %v1023, 0.0
    %v1036 = vmin.f32 %v1028, 0.0
    %v1037 = vmin.f32 %v1031, 0.0
    %v1038 = vmul.f32 %v1034, 1.442695
    %v1039 = vpow.pop %v1038
    %v1040 = vmul.f32 %v1035, 1.442695
    %v1041 = vpow.pop %v1040
    %v1042 = vmul.f32 %v1036, 1.442695
    %v1043 = vpow.pop %v1042
    %v1044 = vmul.f32 %v1037, 1.442695
    %v1045 = vpow.pop %v1044
    %v1046 = vsub.f32 %v1039, 1.0
    %v1047 = vsub.f32 %v1041, 1.0
    %v1048 = vsub.f32 %v1043, 1.0
    %v1049 = vsub.f32 %v1045, 1.0
    %vm1050 = vcmp.gt.f32.partialorder %v1020, 0.0
    %vm1051 = vcmp.gt.f32.partialorder %v1023, 0.0
    %vm1052 = vcmp.gt.f32.partialorder %v1028, 0.0
    %vm1053 = vcmp.gt.f32.partialorder %v1031, 0.0
    %v1054 = vsel %vm1050, %v1020, %v1046
    %v1055 = vsel %vm1051, %v1023, %v1047
    %v1056 = vsel %vm1052, %v1028, %v1048
    %v1057 = vsel %vm1053, %v1031, %v1049
    %v1058 = vld [vmem:[%s6] sm:$0xf]
    %v1059 = vld [vmem:[%s6 + $0x4] sm:$0xf]
    %v1060 = vld [vmem:[%s7] sm:$0xff]
    %v1061 = vld [vmem:[%s7 + $0x8] sm:$0xff]
    %v1062 = vpack.c.bf16 %v1055, %v1054
    %v1063 = vpack.c.bf16 %v1057, %v1056
    %v1066 = vunpack.c.l.b16 %v1058
    %v1067 = vunpack.c.l.b16 %v1059
    %v1068 = vpack.c.b16 %v1067, %v1066
    %v1070 = vsel %vm339, %v1068, 0
    %1072 = vmatprep.subr.bf16.mxu0 0
    %1073 = vmatpush1.bf16.msra.mxu0 %v1062
    %1074 = vmatprep.subr.bf16.mxu0 0
    %1075 = vmatpush1.bf16.msra.mxu0 %v1063
    %1076 = vmatprep.subr.bf16.mxu0 0
    %1077 = vmatpush1.bf16.msra.mxu0 0
    %1078 = vmatprep.subr.bf16.mxu0 0
    %1079 = vmatpush1.bf16.msra.mxu0 0
    %1080 = vmatprep.subr.bf16.mxu0 0
    %1081 = vmatpush1.bf16.msra.mxu0 0
    %1082 = vmatprep.subr.bf16.mxu0 0
    %1083 = vmatpush1.bf16.msra.mxu0 0
    %1084 = vmatprep.subr.bf16.mxu0 0
    %1085 = vmatpush1.bf16.msra.mxu0 0
    %1086 = vmatprep.subr.bf16.mxu0 0
    %1087 = vmatpush1.bf16.msra.mxu0 0
    %1088 = vmatprep.subr.bf16.mxu0 0
    %1089 = vmatpush1.bf16.msra.mxu0 0
    %1090 = vmatprep.subr.bf16.mxu0 0
    %1091 = vmatpush1.bf16.msra.mxu0 0
    %1092 = vmatprep.subr.bf16.mxu0 0
    %1093 = vmatpush1.bf16.msra.mxu0 0
    %1094 = vmatprep.subr.bf16.mxu0 0
    %1095 = vmatpush1.bf16.msra.mxu0 0
    %1096 = vmatprep.subr.bf16.mxu0 0
    %1097 = vmatpush1.bf16.msra.mxu0 0
    %1098 = vmatprep.subr.bf16.mxu0 0
    %1099 = vmatpush1.bf16.msra.mxu0 0
    %1100 = vmatprep.subr.bf16.mxu0 0
    %1101 = vmatpush1.bf16.msra.mxu0 0
    %1102 = vmatprep.subr.bf16.mxu0 0
    %1103 = vmatpush1.bf16.msra.mxu0 0
    %1104 = vmatprep.mubr.bf16.mxu0 0
    %1105 = vmatmul.mubr.bf16.gmra.mrb[0].mxu0 %v1070
    %v1106 = vpop.f32.mrb[0].mxu0
    %v1107 = vadd.f32 0.0, %v1106
    %v1108 = vpop.f32.mrb[0].mxu0
    %v1109 = vpop.f32.mrb[0].mxu0
    %v1110 = vadd.f32 0.0, %v1109
    %v1111 = vpop.f32.mrb[0].mxu0
    %1112 = vdwg.mxu0
    %v1113 = vpack.c.bf16 %v1110, %v1107
    %1115 = vset.pattern.permute.xlu0 0
    %1116 = vperm.xlu0 %1115, %v1060
    %v1117 = vpop.permute.xlu0 %1116
    %1120 = vset.pattern.permute.xlu0 0
    %1121 = vperm.xlu0 %1120, %v1061
    %v1122 = vpop.permute.xlu0 %1121
    %v1125 = vsel %vm60, %v1113, 0
    %1127 = vmatprep.subr.bf16.mxu0 0
    %1128 = vmatpush1.bf16.msra.mxu0 %v681
    %1129 = vmatprep.subr.bf16.mxu0 0
    %1130 = vmatpush1.bf16.msra.mxu0 0
    %1131 = vmatprep.subr.bf16.mxu0 0
    %1132 = vmatpush1.bf16.msra.mxu0 0
    %1133 = vmatprep.subr.bf16.mxu0 0
    %1134 = vmatpush1.bf16.msra.mxu0 0
    %1135 = vmatprep.subr.bf16.mxu0 0
    %1136 = vmatpush1.bf16.msra.mxu0 0
    %1137 = vmatprep.subr.bf16.mxu0 0
    %1138 = vmatpush1.bf16.msra.mxu0 0
    %1139 = vmatprep.subr.bf16.mxu0 0
    %1140 = vmatpush1.bf16.msra.mxu0 0
    %1141 = vmatprep.subr.bf16.mxu0 0
    %1142 = vmatpush1.bf16.msra.mxu0 0
    %1143 = vmatprep.subr.bf16.mxu0 0
    %1144 = vmatpush1.bf16.msra.mxu0 0
    %1145 = vmatprep.subr.bf16.mxu0 0
    %1146 = vmatpush1.bf16.msra.mxu0 0
    %1147 = vmatprep.subr.bf16.mxu0 0
    %1148 = vmatpush1.bf16.msra.mxu0 0
    %1149 = vmatprep.subr.bf16.mxu0 0
    %1150 = vmatpush1.bf16.msra.mxu0 0
    %1151 = vmatprep.subr.bf16.mxu0 0
    %1152 = vmatpush1.bf16.msra.mxu0 0
    %1153 = vmatprep.subr.bf16.mxu0 0
    %1154 = vmatpush1.bf16.msra.mxu0 0
    %1155 = vmatprep.subr.bf16.mxu0 0
    %1156 = vmatpush1.bf16.msra.mxu0 0
    %1157 = vmatprep.subr.bf16.mxu0 0
    %1158 = vmatpush1.bf16.msra.mxu0 0
    %1159 = vmatprep.mubr.bf16.mxu0 0
    %1160 = vmatmul.mubr.bf16.gmra.mrb[0].mxu0 %v1125
    %v1161 = vpop.f32.mrb[0].mxu0
    %v1162 = vadd.f32 %v1117, %v1161
    %v1163 = vpop.f32.mrb[0].mxu0
    %v1164 = vpop.f32.mrb[0].mxu0
    %v1165 = vadd.f32 %v1122, %v1164
    %v1166 = vpop.f32.mrb[0].mxu0
    %1167 = vdwg.mxu0
    %s1168 = scalar_lea.vmem [#allocation2], 16
    %1169 = vst.msk [vmem:[%s1168] sm:$0xff] %vm60, %v1162
    %1170 = vst.msk [vmem:[%s1168 + $0x8] sm:$0xff] %vm60, %v1165
    // Predicated region
    $region34: #{tpu_custom_call.1} parent=1 // pred_check
      _
    $region35: #{tpu_custom_call.1} parent=1 // pred_check_branch
      %1172 = sbr.rel (0) target = $region37
    $region36: #{tpu_custom_call.1} parent=1 // pred_region
      %s1174 = ssub.s32 512, 512
      %1175 = vsyncadd [#allocation3], %s1174
      %s1176 = sshll.u32 [#allocation2], 4
      %s1177 = int_to_ptr.vmem [resolvable:$true] %s1176
      %1182 = dma.vmem_to_hbm [thread:$0]  %s1177, 512, %s8, [#allocation3], 128, 128, 8
    $region37: #{tpu_custom_call.1} parent=1 // pred_fallthru
      _
    // Predicated region
    $region38: #{tpu_custom_call.1} parent=1 // pred_check
      _
    $region39: #{tpu_custom_call.1} parent=1 // pred_check_branch
      %1184 = sbr.rel (0) target = $region41
    $region40: #{tpu_custom_call.1} parent=1 // pred_region
      %1185 = dma.done [#allocation3], 512
    $region41: #{tpu_custom_call.1} parent=1 // pred_fallthru
      _
    %1186 = vsyncpa [#allocation3], 1

</llo_original>
